<compile_context>
chip_gen: v7x
topology: tpu7x:2x2x1
jax: 0.10.0
libtpu: 0.0.40
codegen_flags: <defaults>
</compile_context>

<pallas_src>
import math

import jax
import jax.numpy as jnp
from jax import lax
from jax.experimental import pallas as pl
from jax.experimental.pallas import tpu as pltpu


# --------------------------------------------------------------------------- helpers
def _layernorm(x, gamma, beta, eps=1e-5):
    mu = jnp.mean(x, axis=-1, keepdims=True)
    var = jnp.mean((x - mu) ** 2, axis=-1, keepdims=True)
    return (x - mu) * lax.rsqrt(var + eps) * gamma + beta


def _tpu_config(seq_len):
    """Per-generation tile sizes / VMEM limit / K-V buffer depth."""
    try:
        vmem_bytes = pltpu.get_tpu_info().vmem_capacity_bytes
    except Exception:  # pragma: no cover - conservative fallback
        vmem_bytes = 64 * 1024 * 1024
    if vmem_bytes <= 64 * 1024 * 1024:
        # v7x-class (64 MiB physical): leave headroom for compiler scratch.
        tq, tk, vmem_limit = 256, 256, 48 * 1024 * 1024
    else:
        # v5e / v6e (128 MiB physical): bigger tiles, higher scoped-VMEM limit.
        tq, tk, vmem_limit = 512, 512, 96 * 1024 * 1024
    tq = min(tq, seq_len)
    tk = min(tk, seq_len)
    nk = max(seq_len // max(tk, 1), 1)
    # Deeper K/V streaming only where VMEM allows and there are enough KV steps.
    kv_buf = 3 if (vmem_bytes > 64 * 1024 * 1024 and nk >= 3) else 2
    return tq, tk, kv_buf, vmem_limit


# --------------------------------------------------------------------------- kernels
def _qkv_proj_kernel(x_ref, w_ref, b_ref, o_ref):
    """Fused QKV projection: (TQ, D) @ (D, 3D) with f32 accumulation, bf16 out."""
    x = x_ref[0].astype(jnp.bfloat16)
    y = jnp.dot(x, w_ref[...], preferred_element_type=jnp.float32) + b_ref[...]
    o_ref[0] = y.astype(o_ref.dtype)


def _encoder_flash_kernel(x_ref, q_ref, k_ref, v_ref, bias_ref,
                          wo_ref, bo_ref, g1_ref, beta1_ref,
                          w1_ref, b1_ref, w2_ref, b2_ref, g2_ref, beta2_ref,
                          o_ref, m_sc, l_sc, acc_sc):
    f32, bf16 = jnp.float32, jnp.bfloat16
    ki = pl.program_id(2)
    nk = pl.num_programs(2)

    @pl.when(ki == 0)
    def _():
        m_sc[...] = jnp.full(m_sc.shape, -jnp.inf, f32)
        l_sc[...] = jnp.zeros(l_sc.shape, f32)
        acc_sc[...] = jnp.zeros(acc_sc.shape, f32)

    q = q_ref[0]                      # (H, TQ, hdim) bf16, 1/sqrt(hdim) pre-folded
    k = k_ref[0]                      # (H, TK, hdim) bf16
    v = v_ref[0]                      # (H, TK, hdim) bf16

    # ---- online-softmax attention over this KV tile (all heads batched) ----
    s = jnp.einsum('hqd,hkd->hqk', q, k, preferred_element_type=f32)   # (H, TQ, TK)
    s = s + bias_ref[0]                                                # (1, TK) bcast
    m_prev = m_sc[...]
    m_new = jnp.maximum(m_prev, jnp.max(s, axis=-1, keepdims=True))
    alpha = jnp.exp(m_prev - m_new)
    p = jnp.exp(s - m_new)
    l_sc[...] = alpha * l_sc[...] + jnp.sum(p, axis=-1, keepdims=True)
    acc_sc[...] = alpha * acc_sc[...] + jnp.einsum(
        'hqk,hkd->hqd', p.astype(bf16), v, preferred_element_type=f32)
    m_sc[...] = m_new

    @pl.when(ki == nk - 1)
    def _():
        # finalize attention, then out-proj + residual/LN + FFN + residual/LN
        ctx = acc_sc[...] * pl.reciprocal(l_sc[...], approx=True)      # (H, TQ, hdim)
        # head-merge fused into the output projection (no lane concat):
        attn_h = jnp.einsum('hqd,hdk->hqk', ctx.astype(bf16), wo_ref[...],
                            preferred_element_type=f32)                # (H, TQ, D)
        attn = jnp.sum(attn_h, axis=0) + bo_ref[...]                   # (TQ, D)

        xq = x_ref[0].astype(f32)
        h1 = _layernorm(xq + attn, g1_ref[...], beta1_ref[...])

        ff = jnp.dot(h1.astype(bf16), w1_ref[...],
                     preferred_element_type=f32) + b1_ref[...]
        ff = jnp.maximum(ff, 0.0)
        ff = jnp.dot(ff.astype(bf16), w2_ref[...],
                     preferred_element_type=f32) + b2_ref[...]

        out = _layernorm(h1 + ff, g2_ref[...], beta2_ref[...])
        o_ref[0] = out.astype(o_ref.dtype)


# --------------------------------------------------------------------------- wrapper
def prepare_params(params, n_heads):
    """One-time host-side weight prep (hoisted out of the per-forward path)."""
    D = params['wq'].shape[0]
    assert D % n_heads == 0
    hdim = D // n_heads
    scale = 1.0 / math.sqrt(hdim)
    wqkv = jnp.concatenate([params['wq'] * scale, params['wk'], params['wv']],
                           axis=1).astype(jnp.bfloat16)                 # (D, 3D)
    bqkv = jnp.concatenate([params['bq'] * scale, params['bk'], params['bv']],
                           axis=1).astype(jnp.float32)                  # (1, 3D)
    return {
        'wqkv': wqkv, 'bqkv': bqkv,
        'wo_h': params['wo'].reshape(n_heads, hdim, D).astype(jnp.bfloat16),
        'bo': params['bo'].astype(jnp.float32),
        'g1': params['g1'].astype(jnp.float32),
        'beta1': params['beta1'].astype(jnp.float32),
        'w1': params['w1'].astype(jnp.bfloat16),
        'b1': params['b1'].astype(jnp.float32),
        'w2': params['w2'].astype(jnp.bfloat16),
        'b2': params['b2'].astype(jnp.float32),
        'g2': params['g2'].astype(jnp.float32),
        'beta2': params['beta2'].astype(jnp.float32),
    }


def encoder_layer(x, key_padding_mask, prepped):
    B, S, D = x.shape
    H, hdim, _ = prepped['wo_h'].shape
    tq, tk, kv_buf, vmem_limit = _tpu_config(S)
    assert S % tq == 0 and S % tk == 0
    nq, nk = S // tq, S // tk

    # -------- pass 1: fused QKV projection --------
    def _res2(a):
        nd = a.ndim
        return pl.BlockSpec(a.shape, lambda b, s, _n=nd: (0,) * _n,
                            pipeline_mode=pl.Buffered(1))

    qkv = pl.pallas_call(
        _qkv_proj_kernel,
        out_shape=jax.ShapeDtypeStruct((B, S, 3 * D), jnp.bfloat16),
        grid_spec=pltpu.PrefetchScalarGridSpec(
            num_scalar_prefetch=0,
            grid=(B, nq),
            in_specs=[pl.BlockSpec((1, tq, D), lambda b, s: (b, s, 0)),
                      _res2(prepped['wqkv']), _res2(prepped['bqkv'])],
            out_specs=pl.BlockSpec((1, tq, 3 * D), lambda b, s: (b, s, 0)),
        ),
        compiler_params=pltpu.CompilerParams(
            dimension_semantics=("parallel", "parallel"),
            vmem_limit_bytes=vmem_limit,
        ),
    )(x, prepped['wqkv'], prepped['bqkv'])

    # head-major (B, H, S, hdim) layout plumbing (XLA-side; pure layout, no compute)
    qkv = qkv.reshape(B, S, 3, H, hdim)
    q_h = jnp.transpose(qkv[:, :, 0], (0, 2, 1, 3))
    k_h = jnp.transpose(qkv[:, :, 1], (0, 2, 1, 3))
    v_h = jnp.transpose(qkv[:, :, 2], (0, 2, 1, 3))

    # O(S) additive key-padding bias, kept exact in f32.
    bias = (key_padding_mask.astype(jnp.float32) * (-1e9)).reshape(B, 1, S)

    weights = [prepped['wo_h'], prepped['bo'],
               prepped['g1'], prepped['beta1'],
               prepped['w1'], prepped['b1'], prepped['w2'], prepped['b2'],
               prepped['g2'], prepped['beta2']]

    def _res3(a):
        nd = a.ndim
        return pl.BlockSpec(a.shape, lambda b, q, k, _n=nd: (0,) * _n,
                            pipeline_mode=pl.Buffered(1))   # single-buffer residents

    in_specs = ([pl.BlockSpec((1, tq, D), lambda b, q, k: (b, q, 0)),
                 pl.BlockSpec((1, H, tq, hdim), lambda b, q, k: (b, 0, q, 0)),
                 pl.BlockSpec((1, H, tk, hdim), lambda b, q, k: (b, 0, k, 0),
                              pipeline_mode=pl.Buffered(kv_buf)),
                 pl.BlockSpec((1, H, tk, hdim), lambda b, q, k: (b, 0, k, 0),
                              pipeline_mode=pl.Buffered(kv_buf)),
                 pl.BlockSpec((1, 1, tk), lambda b, q, k: (b, 0, k))]
                + [_res3(a) for a in weights])

    # -------- pass 2: flash-style attention + out-proj + LN + FFN + LN --------
    return pl.pallas_call(
        _encoder_flash_kernel,
        out_shape=jax.ShapeDtypeStruct((B, S, D), x.dtype),
        grid_spec=pltpu.PrefetchScalarGridSpec(
            num_scalar_prefetch=0,
            grid=(B, nq, nk),
            in_specs=in_specs,
            out_specs=pl.BlockSpec((1, tq, D), lambda b, q, k: (b, q, 0)),
            scratch_shapes=[pltpu.VMEM((H, tq, 1), jnp.float32),     # running max
                            pltpu.VMEM((H, tq, 1), jnp.float32),     # running denom
                            pltpu.VMEM((H, tq, hdim), jnp.float32)], # running ctx
        ),
        compiler_params=pltpu.CompilerParams(
            dimension_semantics=("parallel", "parallel", "arbitrary"),
            vmem_limit_bytes=vmem_limit,
        ),
    )(x, q_h, k_h, v_h, bias, *weights)


# --------------------------------------------------------------------------- reference
def encoder_layer_ref(x, key_padding_mask, params, n_heads):
    """Pure-JAX f32 reference matching the PyTorch forward (eval mode)."""
    B, S, D = x.shape
    hdim = D // n_heads
    q = x @ params['wq'] + params['bq']
    k = x @ params['wk'] + params['bk']
    v = x @ params['wv'] + params['bv']
    q = q.reshape(B, S, n_heads, hdim).transpose(0, 2, 1, 3)
    k = k.reshape(B, S, n_heads, hdim).transpose(0, 2, 1, 3)
    v = v.reshape(B, S, n_heads, hdim).transpose(0, 2, 1, 3)
    scores = jnp.einsum('bhqd,bhkd->bhqk', q, k) / math.sqrt(hdim)
    scores = scores - key_padding_mask[:, None, None, :] * 1e9
    p = jax.nn.softmax(scores, axis=-1)
    ctx = jnp.einsum('bhqk,bhkd->bhqd', p, v).transpose(0, 2, 1, 3).reshape(B, S, D)
    attn = ctx @ params['wo'] + params['bo']

    def ln(z, g, b):
        mu = z.mean(-1, keepdims=True)
        var = ((z - mu) ** 2).mean(-1, keepdims=True)
        return (z - mu) / jnp.sqrt(var + 1e-5) * g + b

    h1 = ln(x + attn, params['g1'], params['beta1'])
    ff = jnp.maximum(h1 @ params['w1'] + params['b1'], 0.0) @ params['w2'] + params['b2']
    return ln(h1 + ff, params['g2'], params['beta2'])


def init_params(key, dim, dff):
    ks = jax.random.split(key, 8)
    p = {
        'wq': jax.random.normal(ks[0], (dim, dim), jnp.float32) * 0.05,
        'bq': jax.random.normal(ks[1], (1, dim), jnp.float32) * 0.05,
        'wk': jax.random.normal(ks[2], (dim, dim), jnp.float32) * 0.05,
        'bk': jax.random.normal(ks[3], (1, dim), jnp.float32) * 0.05,
        'wv': jax.random.normal(ks[4], (dim, dim), jnp.float32) * 0.05,
        'bv': jax.random.normal(ks[5], (1, dim), jnp.float32) * 0.05,
        'wo': jax.random.normal(ks[6], (dim, dim), jnp.float32) * 0.05,
        'bo': jax.random.normal(ks[7], (1, dim), jnp.float32) * 0.05,
        'g1': jnp.ones((1, dim), jnp.float32),
        'beta1': jnp.zeros((1, dim), jnp.float32),
        'g2': jnp.ones((1, dim), jnp.float32),
        'beta2': jnp.zeros((1, dim), jnp.float32),
    }
    kf = jax.random.split(jax.random.fold_in(key, 1), 4)
    p['w1'] = jax.random.normal(kf[0], (dim, dff), jnp.float32) * 0.05
    p['b1'] = jax.random.normal(kf[1], (1, dff), jnp.float32) * 0.05
    p['w2'] = jax.random.normal(kf[2], (dff, dim), jnp.float32) * 0.05
    p['b2'] = jax.random.normal(kf[3], (1, dim), jnp.float32) * 0.05
    return p


if __name__ == "__main__":
    B, S, DIM, N_HEADS, DFF = 2, 8, 32, 4, 64

    key = jax.random.PRNGKey(0)
    kx, kp = jax.random.split(key)
    x = jax.random.normal(kx, (B, S, DIM), jnp.float32)

    # key-padding mask: 1.0 = masked key. Batch 1 masks its last two key positions.
    key_mask = jnp.zeros((B, S), jnp.float32)
    key_mask = key_mask.at[1, -2:].set(1.0)

    params = init_params(kp, DIM, DFF)
    prepped = prepare_params(params, N_HEADS)   # one-time host-side weight prep

    out = encoder_layer(x, key_mask, prepped)
    out = jax.block_until_ready(out)

    ref = encoder_layer_ref(x, key_mask, params, N_HEADS)
    assert out.shape == (B, S, DIM)
    # bf16 matmul operands (f32 accumulation) + approx reciprocal -> loosened tolerance
    assert jnp.allclose(out, ref, atol=2e-2, rtol=2e-2), "mismatch vs reference"
    print("KERNEL_OK")
</pallas_src>

<mosaic_0001>
module attributes {stable_mosaic.version = 11 : i64} {
  func.func @_qkv_proj_kernel(%arg0: i32, %arg1: i32, %arg2: memref<1x8x32xf32, #tpu.memory_space<vmem>>, %arg3: memref<32x96xbf16, #tpu.memory_space<vmem>>, %arg4: memref<1x96xf32, #tpu.memory_space<vmem>>, %arg5: memref<1x8x96xbf16, #tpu.memory_space<vmem>>) attributes {dimension_semantics = [#tpu.dimension_semantics<parallel>, #tpu.dimension_semantics<parallel>], iteration_bounds = array<i64: 2, 1>, scalar_prefetch = 0 : i64, scratch_operands = 0 : i64, tpu.core_type = #tpu.core_type<tc>, window_params = [{transform_indices = @transform_0, window_bounds = array<i64: 1, 8, 32>}, {pipeline_mode = #tpu.pipeline_mode<synchronous>, transform_indices = @transform_1, window_bounds = array<i64: 32, 96>}, {pipeline_mode = #tpu.pipeline_mode<synchronous>, transform_indices = @transform_2, window_bounds = array<i64: 1, 96>}, {transform_indices = @transform_3, window_bounds = array<i64: 1, 8, 96>}]} {
    %c0 = arith.constant 0 : index
    %c0_0 = arith.constant 0 : index
    %c0_1 = arith.constant 0 : index
    %0 = vector.load %arg2[%c0, %c0_0, %c0_1] : memref<1x8x32xf32, #tpu.memory_space<vmem>>, vector<1x8x32xf32>
    %1 = vector.shape_cast %0 : vector<1x8x32xf32> to vector<8x32xf32>
    %2 = arith.truncf %1 : vector<8x32xf32> to vector<8x32xbf16>
    %c0_2 = arith.constant 0 : index
    %c0_3 = arith.constant 0 : index
    %3 = vector.load %arg3[%c0_2, %c0_3] : memref<32x96xbf16, #tpu.memory_space<vmem>>, vector<32x96xbf16>
    %cst = arith.constant dense<0.000000e+00> : vector<8x96xf32>
    %4 = tpu.matmul %2, %3, %cst {dimension_numbers = #tpu.dot_dimension_numbers<[1], [0], [0], [1], [0, 0, 1, 1], [], []>} : vector<8x32xbf16>, vector<32x96xbf16>, vector<8x96xf32> -> vector<8x96xf32>
    %c0_4 = arith.constant 0 : index
    %c0_5 = arith.constant 0 : index
    %5 = vector.load %arg4[%c0_4, %c0_5] : memref<1x96xf32, #tpu.memory_space<vmem>>, vector<1x96xf32>
    %6 = vector.broadcast %5 : vector<1x96xf32> to vector<8x96xf32>
    %7 = arith.addf %4, %6 : vector<8x96xf32>
    %8 = arith.truncf %7 : vector<8x96xf32> to vector<8x96xbf16>
    %c0_6 = arith.constant 0 : index
    %c0_7 = arith.constant 0 : index
    %c0_8 = arith.constant 0 : index
    %9 = vector.load %arg5[%c0_6, %c0_7, %c0_8] : memref<1x8x96xbf16, #tpu.memory_space<vmem>>, vector<1x8x96xbf16>
    %10 = vector.shape_cast %9 : vector<1x8x96xbf16> to vector<8x96xbf16>
    %11 = vector.shape_cast %8 : vector<8x96xbf16> to vector<1x8x96xbf16>
    tpu.vector_store %arg5[%c0_6, %c0_7, %c0_8], %11 {strides = array<i32>} : memref<1x8x96xbf16, #tpu.memory_space<vmem>>, vector<1x8x96xbf16>,
    return
  }
  func.func @transform_0(%arg0: i32, %arg1: i32) -> (i32, i32, i32) {
    %c0_i32 = arith.constant 0 : i32
    %c0_i32_0 = arith.constant 0 : i32
    return %arg0, %arg1, %c0_i32 : i32, i32, i32
  }
  func.func @transform_1(%arg0: i32, %arg1: i32) -> (i32, i32) {
    %c0_i32 = arith.constant 0 : i32
    %c0_i32_0 = arith.constant 0 : i32
    %c0_i32_1 = arith.constant 0 : i32
    return %c0_i32, %c0_i32_0 : i32, i32
  }
  func.func @transform_2(%arg0: i32, %arg1: i32) -> (i32, i32) {
    %c0_i32 = arith.constant 0 : i32
    %c0_i32_0 = arith.constant 0 : i32
    %c0_i32_1 = arith.constant 0 : i32
    return %c0_i32, %c0_i32_0 : i32, i32
  }
  func.func @transform_3(%arg0: i32, %arg1: i32) -> (i32, i32, i32) {
    %c0_i32 = arith.constant 0 : i32
    %c0_i32_0 = arith.constant 0 : i32
    return %arg0, %arg1, %c0_i32 : i32, i32, i32
  }
}

</mosaic_0001>

<llo_original>
// kernel: tpu_custom_call.1
$region0: #{tpu_custom_call.1}
  #allocation0 [shape = 'u32[]', space=smem, size = 0x4, offset = 0x4, fixed_abs, tag = 'smem constant byte address 0x4 - core index']
  #allocation1 [shape = 'u32[144,128]{1,0:T(1,128)}', space=vmem, size = 0x12000, scoped, tag = 'internal scratch']
  %s0 = inlined_call_operand.hbm [shape: f32[2,8,32], index: 0, kind: input, shape index: {}]
  %s1 = inlined_call_operand.hbm [shape: bf16[32,96], index: 1, kind: input, shape index: {}]
  %s2 = inlined_call_operand.vmem [shape: f32[1,96], index: 2, kind: input, shape index: {}]
  %s3 = inlined_call_operand.hbm [shape: bf16[2,8,96], index: 3, kind: output, shape index: {}]
  %s4 = sld [smem:[#allocation0]]
  $region53: #{tpu_custom_call.1} parent=0
    _
  %s6 = ssub.s32 1, %s4
  %s7 = scalar_select 0, %s6, %s4
  $region1: #{tpu_custom_call.1} parent=0
    #allocation2 [shape = 'u8[8192]{0}', space=vmem, size = 0x2000, scoped, tag = 'input window, operand 0']
    #allocation3 [shape = 's32[2]{0}', space=sflag, size = 0x8, scoped, tag = 'scoped memory for tpu_custom_call.1']
    #allocation4 [shape = 's32[2]{0}', space=sflag, size = 0x8, scoped, tag = 'scoped memory for tpu_custom_call.1']
    #allocation5 [shape = 'u8[8192]{0}', space=vmem, size = 0x2000, scoped, tag = 'input window, operand 1, single buffered']
    #allocation6 [shape = 's32[1]{0}', space=sflag, size = 0x4, scoped, tag = 'scoped memory for tpu_custom_call.1']
    #allocation7 [shape = 'u8[4096]{0}', space=vmem, size = 0x1000, scoped, tag = 'output window, operand 0']
    %8 = vsyncpa [#allocation3], 0
    %s9 = scalar_lea.sflag [#allocation3], 1
    %10 = vsyncpa %s9, 0
    %11 = vsyncpa [#allocation6], 0
    %12 = vsyncpa [#allocation4], 0
    %s13 = scalar_lea.sflag [#allocation4], 1
    %14 = vsyncpa %s13, 0
    loop: start=0, step=1, limit=4
    $region2: #{tpu_custom_call.1} parent=1 // loop_pre_header
      _
    $region3: #{tpu_custom_call.1} parent=1 // loop_header
      %s16 = sphi 0, %s20
      %p17 = scmp.ge.s32.totalorder %s16, 4
      %s23 = sphi 0, %s35
      %s24 = sphi 0, %s31
      %s25 = sphi 0, %s23
      %s26 = sphi 0, %s24
      %s27 = sphi 0, %s25
      %s28 = sphi 0, %s26
      %s40 = sphi 0, %s42
      %s43 = sphi 0, %s40
      %s44 = sphi 0, %s43
      %s60 = sphi 0, %s44
      %s64 = sphi 0, %s64
      %s66 = sphi 0, %s64
      %s67 = sphi 0, %s66
      %s81 = sphi 0, %s67
      %s85 = sphi 0, %s85
      %s87 = sphi 0, %s85
      %s88 = sphi 0, %s87
      %s102 = sphi 0, %s88
      %s110 = sphi 0, %s112
      %s113 = sphi 0, %s110
      %s114 = sphi 0, %s113
      %s130 = sphi 0, %s114
    $region4: #{tpu_custom_call.1} parent=1 // loop_header_branch
      %19 = sbr.rel (%p17) target = $region8
    $region5: #{tpu_custom_call.1} parent=1 // loop_body
      %s21 = ssub.s32 %s16, 1
      %s22 = ssub.s32 %s16, 2
      %s29 = sadd.s32 1, %s24
      %p30 = scmp.ge.s32.totalorder %s29, 1
      %s31 = scalar_select %p30, 0, %s29
      %s32 = sadd.s32 1, %s23
      %s33 = scalar_select %p30, %s32, %s23
      %p34 = scmp.ge.s32.totalorder %s33, 2
      %s35 = scalar_select %p34, 0, %s33
      %s36 = ssub.s32 %s23, %s35
      %s37 = ssub.s32 %s24, %s31
      %s38 = sor.u32 %s36, %s37
      %p39 = scmp.eq.s32.totalorder %s38, 0
      %s41 = sadd.s32 %s40, 1
      %s42 = scalar_select %p39, %s40, %s41
      %p45 = pneg %p39
      %p46 = scmp.eq.s32.totalorder %s16, 1
      %p47 = por %p45, %p46
      %p48 = scmp.ne.s32.totalorder %s40, %s43
      %p49 = scmp.eq.s32.totalorder %s16, 0
      %p50 = por %p48, %p49
      %p51 = scmp.ne.s32.totalorder %s40, %s43
      %p52 = scmp.eq.s32.totalorder %s21, 1
      %p53 = por %p51, %p52
      %p54 = scmp.ne.s32.totalorder %s43, %s44
      %p55 = scmp.eq.s32.totalorder %s21, 0
      %p56 = por %p54, %p55
      %p57 = scmp.ne.s32.totalorder %s43, %s44
      %p58 = scmp.eq.s32.totalorder %s22, 1
      %p59 = por %p57, %p58
      %p61 = scmp.ne.s32.totalorder %s44, %s60
      %p62 = scmp.eq.s32.totalorder %s22, 0
      %p63 = por %p61, %p62
      %s65 = sadd.s32 %s64, 1
      %p68 = scmp.eq.s32.totalorder %s16, 1
      %p69 = scmp.ne.s32.totalorder %s64, %s66
      %p70 = scmp.eq.s32.totalorder %s16, 0
      %p71 = por %p69, %p70
      %p72 = scmp.ne.s32.totalorder %s64, %s66
      %p73 = scmp.eq.s32.totalorder %s21, 1
      %p74 = por %p72, %p73
      %p75 = scmp.ne.s32.totalorder %s66, %s67
      %p76 = scmp.eq.s32.totalorder %s21, 0
      %p77 = por %p75, %p76
      %p78 = scmp.ne.s32.totalorder %s66, %s67
      %p79 = scmp.eq.s32.totalorder %s22, 1
      %p80 = por %p78, %p79
      %p82 = scmp.ne.s32.totalorder %s67, %s81
      %p83 = scmp.eq.s32.totalorder %s22, 0
      %p84 = por %p82, %p83
      %s86 = sadd.s32 %s85, 1
      %p89 = scmp.eq.s32.totalorder %s16, 1
      %p90 = scmp.ne.s32.totalorder %s85, %s87
      %p91 = scmp.eq.s32.totalorder %s16, 0
      %p92 = por %p90, %p91
      %p93 = scmp.ne.s32.totalorder %s85, %s87
      %p94 = scmp.eq.s32.totalorder %s21, 1
      %p95 = por %p93, %p94
      %p96 = scmp.ne.s32.totalorder %s87, %s88
      %p97 = scmp.eq.s32.totalorder %s21, 0
      %p98 = por %p96, %p97
      %p99 = scmp.ne.s32.totalorder %s87, %s88
      %p100 = scmp.eq.s32.totalorder %s22, 1
      %p101 = por %p99, %p100
      %p103 = scmp.ne.s32.totalorder %s88, %s102
      %p104 = scmp.eq.s32.totalorder %s22, 0
      %p105 = por %p103, %p104
      %s106 = ssub.s32 %s23, %s35
      %s107 = ssub.s32 %s24, %s31
      %s108 = sor.u32 %s106, %s107
      %p109 = scmp.eq.s32.totalorder %s108, 0
      %s111 = sadd.s32 %s110, 1
      %s112 = scalar_select %p109, %s110, %s111
      %p115 = pneg %p109
      %p116 = scmp.eq.s32.totalorder %s16, 1
      %p117 = por %p115, %p116
      %p118 = scmp.ne.s32.totalorder %s110, %s113
      %p119 = scmp.eq.s32.totalorder %s16, 0
      %p120 = por %p118, %p119
      %p121 = scmp.ne.s32.totalorder %s110, %s113
      %p122 = scmp.eq.s32.totalorder %s21, 1
      %p123 = por %p121, %p122
      %p124 = scmp.ne.s32.totalorder %s113, %s114
      %p125 = scmp.eq.s32.totalorder %s21, 0
      %p126 = por %p124, %p125
      %p127 = scmp.ne.s32.totalorder %s113, %s114
      %p128 = scmp.eq.s32.totalorder %s22, 1
      %p129 = por %p127, %p128
      %p131 = scmp.ne.s32.totalorder %s114, %s130
      %p132 = scmp.eq.s32.totalorder %s22, 0
      %p133 = por %p131, %p132
      %p134 = scmp.le.s32.totalorder 1, %s16
      %p135 = scmp.lt.s32.totalorder %s16, 3
      %p136 = pnand %p134, %p135
      %p137 = pneg %p136
      // Predicated region
      $region9: #{tpu_custom_call.1} parent=5 // pred_check
        _
      $region10: #{tpu_custom_call.1} parent=5 // pred_check_branch
        %139 = sbr.rel (%p136) target = $region12
      $region11: #{tpu_custom_call.1} parent=5 // pred_region
        %s140 = ssub.s32 %s16, 1
        // Predicated region
        $region13: #{tpu_custom_call.1} parent=11 // pred_check
          %p141 = pneg %p77
        $region14: #{tpu_custom_call.1} parent=11 // pred_check_branch
          %143 = sbr.rel (%p141) target = $region16
        $region15: #{tpu_custom_call.1} parent=11 // pred_region
          %s145 = ssub.s32 256, 256
          %146 = vsyncadd [#allocation6], %s145
          %s147 = sshll.u32 [#allocation5], 4
          %s148 = int_to_ptr.vmem [resolvable:$true] %s147
          %153 = dma.hbm_to_vmem [thread:$0]  %s1, 256, %s148, [#allocation6], 64, 64, 4
        $region16: #{tpu_custom_call.1} parent=11 // pred_fallthru
          _
        // Predicated region
        $region17: #{tpu_custom_call.1} parent=11 // pred_check
          %p154 = pneg %p98
        $region18: #{tpu_custom_call.1} parent=11 // pred_check_branch
          %156 = sbr.rel (%p154) target = $region20
        $region19: #{tpu_custom_call.1} parent=11 // pred_region
          _
        $region20: #{tpu_custom_call.1} parent=11 // pred_fallthru
          _
      $region12: #{tpu_custom_call.1} parent=5 // pred_fallthru
        _
      %p157 = scmp.lt.s32.totalorder %s16, 2
      // Predicated region
      $region21: #{tpu_custom_call.1} parent=5 // pred_check
        %p158 = pneg %p157
      $region22: #{tpu_custom_call.1} parent=5 // pred_check_branch
        %160 = sbr.rel (%p158) target = $region24
      $region23: #{tpu_custom_call.1} parent=5 // pred_region
        // Predicated region
        $region25: #{tpu_custom_call.1} parent=23 // pred_check
          %p161 = pneg %p50
        $region26: #{tpu_custom_call.1} parent=23 // pred_check_branch
          %163 = sbr.rel (%p161) target = $region28
        $region27: #{tpu_custom_call.1} parent=23 // pred_region
          %s164 = sand.u32 %s40, 1
          %s165 = scalar_lea.sflag [#allocation3], %s164
          %s166 = sand.u32 %s40, 1
          %s167 = smul.addr %s166, 8
          %s168 = scalar_lea.vmem [#allocation2], %s167
          %s170 = ssub.s32 128, 128
          %171 = vsyncadd %s165, %s170
          %s172 = sadd.s32 %s24, %s23
          %s173 = smul.addr %s172, 128
          %s174 = scalar_lea.hbm %s0, %s173
          %s176 = sshll.u32 %s168, 4
          %s177 = int_to_ptr.vmem [resolvable:$true] %s176
          %179 = dma.hbm_to_vmem [thread:$0]  %s174, 128, %s177, %s165
        $region28: #{tpu_custom_call.1} parent=23 // pred_fallthru
          _
      $region24: #{tpu_custom_call.1} parent=5 // pred_fallthru
        _
      %p180 = scmp.le.s32.totalorder 1, %s16
      %p181 = scmp.lt.s32.totalorder %s16, 3
      %p182 = pnand %p180, %p181
      %p183 = pneg %p182
      // Predicated region
      $region29: #{tpu_custom_call.1} parent=5 // pred_check
        _
      $region30: #{tpu_custom_call.1} parent=5 // pred_check_branch
        %185 = sbr.rel (%p182) target = $region32
      $region31: #{tpu_custom_call.1} parent=5 // pred_region
        %s186 = ssub.s32 %s16, 1
        %s187 = sand.u32 %s43, 1
        %s188 = scalar_lea.sflag [#allocation3], %s187
        %s189 = sand.u32 %s43, 1
        %s190 = smul.addr %s189, 8
        %s191 = scalar_lea.vmem [#allocation2], %s190
        // Predicated region
        $region33: #{tpu_custom_call.1} parent=31 // pred_check
          %p192 = pneg %p56
        $region34: #{tpu_custom_call.1} parent=31 // pred_check_branch
          %194 = sbr.rel (%p192) target = $region36
        $region35: #{tpu_custom_call.1} parent=31 // pred_region
          %195 = dma.done %s188, 128
        $region36: #{tpu_custom_call.1} parent=31 // pred_fallthru
          _
        // Predicated region
        $region37: #{tpu_custom_call.1} parent=31 // pred_check
          %p196 = pneg %p77
        $region38: #{tpu_custom_call.1} parent=31 // pred_check_branch
          %198 = sbr.rel (%p196) target = $region40
        $region39: #{tpu_custom_call.1} parent=31 // pred_region
          %199 = dma.done [#allocation6], 256
        $region40: #{tpu_custom_call.1} parent=31 // pred_fallthru
          _
        %s200 = sand.u32 %s43, 1
        %s201 = scalar_lea.sflag [#allocation3], %s200
        %s202 = sand.u32 %s43, 1
        %s203 = smul.addr %s202, 8
        %s204 = scalar_lea.vmem [#allocation2], %s203
        %p205 = pneg %p56
        %p206 = pneg %p53
        %p207 = pneg %p77
        %p208 = pneg %p74
        %p209 = pneg %p98
        %p210 = pneg %p95
        %p211 = pneg %p126
        %p212 = pneg %p123
        %s213 = sand.u32 %s113, 1
        %s214 = scalar_lea.sflag [#allocation4], %s213
        %s215 = sand.u32 %s113, 1
        %s216 = smul.addr %s215, 4
        %s217 = scalar_lea.vmem [#allocation7], %s216
        %v219 = vld [vmem:[%s191] sm:$0xff]
        %v220 = vpack.c.bf16 %v219, %v219
        %v221 = vld [vmem:[#allocation5] sm:$0xf]
        %v222 = vld [vmem:[#allocation5 + $0x4] sm:$0xf]
        %v223 = vld [vmem:[#allocation5 + $0x8] sm:$0xf]
        %v224 = vld [vmem:[#allocation5 + $0xc] sm:$0xf]
        %v225 = vld [vmem:[%s2] sm:$0x1]
        %v227 = vlaneseq
        %v228 = vshrl.u32 %v227, 7
        %v229 = vsub.s32 0, %v228
        %v230 = vrot.slane %v225, %v229
        %v236 = vunpack.c.l.b16 %v221
        %v237 = vunpack.c.l.b16 %v222
        %v238 = vunpack.c.l.b16 %v223
        %v239 = vunpack.c.l.b16 %v224
        %v240 = vpack.c.b16 %v237, %v236
        %v241 = vpack.c.b16 %v239, %v238
        %vm244 = vcmask 261120
        %v246 = vsel %vm244, %v220, 0
        %248 = vmatprep.subr.bf16.mxu0 0
        %249 = vmatpush1.bf16.msra.mxu0 %v240
        %250 = vmatprep.subr.bf16.mxu0 0
        %251 = vmatpush1.bf16.msra.mxu0 %v241
        %252 = vmatprep.subr.bf16.mxu0 0
        %253 = vmatpush1.bf16.msra.mxu0 0
        %254 = vmatprep.subr.bf16.mxu0 0
        %255 = vmatpush1.bf16.msra.mxu0 0
        %256 = vmatprep.subr.bf16.mxu0 0
        %257 = vmatpush1.bf16.msra.mxu0 0
        %258 = vmatprep.subr.bf16.mxu0 0
        %259 = vmatpush1.bf16.msra.mxu0 0
        %260 = vmatprep.subr.bf16.mxu0 0
        %261 = vmatpush1.bf16.msra.mxu0 0
        %262 = vmatprep.subr.bf16.mxu0 0
        %263 = vmatpush1.bf16.msra.mxu0 0
        %264 = vmatprep.subr.bf16.mxu0 0
        %265 = vmatpush1.bf16.msra.mxu0 0
        %266 = vmatprep.subr.bf16.mxu0 0
        %267 = vmatpush1.bf16.msra.mxu0 0
        %268 = vmatprep.subr.bf16.mxu0 0
        %269 = vmatpush1.bf16.msra.mxu0 0
        %270 = vmatprep.subr.bf16.mxu0 0
        %271 = vmatpush1.bf16.msra.mxu0 0
        %272 = vmatprep.subr.bf16.mxu0 0
        %273 = vmatpush1.bf16.msra.mxu0 0
        %274 = vmatprep.subr.bf16.mxu0 0
        %275 = vmatpush1.bf16.msra.mxu0 0
        %276 = vmatprep.subr.bf16.mxu0 0
        %277 = vmatpush1.bf16.msra.mxu0 0
        %278 = vmatprep.subr.bf16.mxu0 0
        %279 = vmatpush1.bf16.msra.mxu0 0
        %280 = vmatprep.mubr.bf16.mxu0 0
        %281 = vmatmul.mubr.bf16.gmra.mrb[0].mxu0 %v246
        %v282 = vpop.f32.mrb[0].mxu0
        %v283 = vadd.f32 %v230, %v282
        %v284 = vpop.f32.mrb[0].mxu0
        %v285 = vpop.f32.mrb[0].mxu0
        %v286 = vpop.f32.mrb[0].mxu0
        %287 = vdwg.mxu0
        %v288 = vpack.c.bf16 %v283, %v283
        %vm289 = vcmask 781312
        %290 = vst.msk [vmem:[%s217] sm:$0xf] %vm289, %v288
        %s291 = sand.u32 %s113, 1
        %s292 = scalar_lea.sflag [#allocation4], %s291
        %s293 = sand.u32 %s113, 1
        %s294 = smul.addr %s293, 4
        %s295 = scalar_lea.vmem [#allocation7], %s294
        // Predicated region
        $region41: #{tpu_custom_call.1} parent=31 // pred_check
          %p296 = pneg %p123
        $region42: #{tpu_custom_call.1} parent=31 // pred_check_branch
          %298 = sbr.rel (%p296) target = $region44
        $region43: #{tpu_custom_call.1} parent=31 // pred_region
          %s300 = ssub.s32 64, 64
          %301 = vsyncadd %s292, %s300
          %s302 = sadd.s32 %s26, %s25
          %s303 = smul.addr %s302, 64
          %s304 = scalar_lea.hbm %s3, %s303
          %s306 = sshll.u32 %s295, 4
          %s307 = int_to_ptr.vmem [resolvable:$true] %s306
          %309 = dma.vmem_to_hbm [thread:$0]  %s307, 64, %s304, %s292
        $region44: #{tpu_custom_call.1} parent=31 // pred_fallthru
          _
      $region32: #{tpu_custom_call.1} parent=5 // pred_fallthru
        _
      %p310 = scmp.le.s32.totalorder 2, %s16
      // Predicated region
      $region45: #{tpu_custom_call.1} parent=5 // pred_check
        %p311 = pneg %p310
      $region46: #{tpu_custom_call.1} parent=5 // pred_check_branch
        %313 = sbr.rel (%p311) target = $region48
      $region47: #{tpu_custom_call.1} parent=5 // pred_region
        %s314 = ssub.s32 %s16, 2
        // Predicated region
        $region49: #{tpu_custom_call.1} parent=47 // pred_check
          %p315 = pneg %p129
        $region50: #{tpu_custom_call.1} parent=47 // pred_check_branch
          %317 = sbr.rel (%p315) target = $region52
        $region51: #{tpu_custom_call.1} parent=47 // pred_region
          %s318 = sand.u32 %s114, 1
          %s319 = scalar_lea.sflag [#allocation4], %s318
          %s320 = sand.u32 %s114, 1
          %s321 = smul.addr %s320, 4
          %s322 = scalar_lea.vmem [#allocation7], %s321
          %323 = dma.done %s319, 64
        $region52: #{tpu_custom_call.1} parent=47 // pred_fallthru
          _
      $region48: #{tpu_custom_call.1} parent=5 // pred_fallthru
        _
    $region6: #{tpu_custom_call.1} parent=1 // loop_footer
      %s20 = sadd.s32 1, %s16
    $region7: #{tpu_custom_call.1} parent=1 // loop_footer_branch
      %15 = sbr.rel target = $region3
    $region8: #{tpu_custom_call.1} parent=1 // loop_exit
      _
    %324 = vsyncpa [#allocation3], 1
    %s325 = scalar_lea.sflag [#allocation3], 1
    %326 = vsyncpa %s325, 1
    %327 = vsyncpa [#allocation6], 1
    %328 = vsyncpa [#allocation4], 1
    %s329 = scalar_lea.sflag [#allocation4], 1
    %330 = vsyncpa %s329, 1

</llo_original>
